<compile_context>
chip_gen: v5e
topology: v5e:2x2
jax: 0.10.0
libtpu: 0.0.40
codegen_flags: <defaults>
</compile_context>

<pallas_src>
import jax
import jax.numpy as jnp
from jax.experimental import pallas as pl
from jax.experimental.pallas import tpu as pltpu


def _round_up(x, m):
    return ((x + m - 1) // m) * m


def go2p_kernel(a_mf_ref, xw_mf_ref, b_mf_ref,
                a_bp_ref, xw_bp_ref, b_bp_ref,
                a_cc_ref, xw_cc_ref, b_cc_ref,
                o_ref):
    def relation(a_ref, xw_ref, b_ref):
        # A tile streamed as bf16 (values 0/1, exact); aggregate in f32 on the MXU.
        msg = jnp.dot(a_ref[...].astype(jnp.float32), xw_ref[...],
                      preferred_element_type=jnp.float32)
        return jnp.maximum(msg + b_ref[...], 0.0)

    o_ref[...] = (relation(a_mf_ref, xw_mf_ref, b_mf_ref)
                  + relation(a_bp_ref, xw_bp_ref, b_bp_ref)
                  + relation(a_cc_ref, xw_cc_ref, b_cc_ref))


def go_to_p(h_p, h_mf, h_bp, h_cc, graph, params, *, tile_m=128):
    """Forward pass of GO_to_P.

    graph:  dict with dense adjacencies 'A_mf' [Np, Nmf], 'A_bp' [Np, Nbp],
            'A_cc' [Np, Ncc] (dst = protein rows, src = GO-term cols).
    params: dict with 'W_mf','b_mf','W_bp','b_bp','W_cc','b_cc'.
    Returns updated protein features [Np, H].
    """
    del h_p  # no protein->protein relation: output depends only on GO-term feats

    n_p = graph["A_mf"].shape[0]
    n_hidden = h_mf.shape[1]
    hp = _round_up(n_hidden, 128)                 # lane-dense hidden dim
    tile_m = min(tile_m, _round_up(n_p, 8))       # don't over-tile tiny graphs
    np_pad = _round_up(n_p, tile_m)
    grid_m = np_pad // tile_m

    def prep_relation(a, x, w, b):
        n_src = a.shape[1]
        n_src_pad = _round_up(n_src, 128)
        # Stream A as bf16 (exact for 0/1) to halve HBM traffic.
        a_pad = jnp.pad(a.astype(jnp.float32),
                        ((0, np_pad - n_p), (0, n_src_pad - n_src))
                        ).astype(jnp.bfloat16)
        # Hoisted projection: computed once, not once per row tile.
        xw = jnp.dot(x, w, preferred_element_type=jnp.float32)
        xw_pad = jnp.pad(xw, ((0, n_src_pad - n_src), (0, hp - n_hidden)))
        b_pad = jnp.pad(jnp.asarray(b, jnp.float32).reshape(1, -1),
                        ((0, 0), (0, hp - n_hidden)))
        return a_pad, xw_pad, b_pad

    a_mf, xw_mf, b_mf = prep_relation(graph["A_mf"], h_mf, params["W_mf"], params["b_mf"])
    a_bp, xw_bp, b_bp = prep_relation(graph["A_bp"], h_bp, params["W_bp"], params["b_bp"])
    a_cc, xw_cc, b_cc = prep_relation(graph["A_cc"], h_cc, params["W_cc"], params["b_cc"])

    args = (a_mf, xw_mf, b_mf, a_bp, xw_bp, b_bp, a_cc, xw_cc, b_cc)

    def a_spec(a):
        return pl.BlockSpec((tile_m, a.shape[1]), lambda i: (i, 0))

    def full_spec(arr):
        return pl.BlockSpec(arr.shape, lambda i: (0, 0))

    in_specs = [
        a_spec(a_mf), full_spec(xw_mf), full_spec(b_mf),
        a_spec(a_bp), full_spec(xw_bp), full_spec(b_bp),
        a_spec(a_cc), full_spec(xw_cc), full_spec(b_cc),
    ]

    n_src_total = a_mf.shape[1] + a_bp.shape[1] + a_cc.shape[1]
    cost = pl.CostEstimate(
        flops=int(2 * np_pad * n_src_total * hp),
        transcendentals=0,
        bytes_accessed=int((a_mf.size + a_bp.size + a_cc.size) * 2
                           + (xw_mf.size + xw_bp.size + xw_cc.size) * 4
                           + np_pad * hp * 4),
    )

    out = pl.pallas_call(
        go2p_kernel,
        out_shape=jax.ShapeDtypeStruct((np_pad, hp), jnp.float32),
        grid_spec=pl.GridSpec(
            grid=(grid_m,),
            in_specs=in_specs,
            out_specs=pl.BlockSpec((tile_m, hp), lambda i: (i, 0)),
        ),
        compiler_params=pltpu.CompilerParams(
            dimension_semantics=("parallel",),        # shards row tiles across TCs (v7x)
            vmem_limit_bytes=48 * 1024 * 1024,
        ),
        cost_estimate=cost,
    )(*args)

    return out[:n_p, :n_hidden]


def _ref_forward(h_mf, h_bp, h_cc, graph, params):
    def rel(a, x, w, b):
        return jnp.maximum(a @ (x @ w) + b, 0.0)
    return (rel(graph["A_mf"], h_mf, params["W_mf"], params["b_mf"])
            + rel(graph["A_bp"], h_bp, params["W_bp"], params["b_bp"])
            + rel(graph["A_cc"], h_cc, params["W_cc"], params["b_cc"]))


if __name__ == "__main__":
    key = jax.random.PRNGKey(0)
    n_hidden = 32
    n_protein, n_mf, n_bp, n_cc = 16, 8, 8, 8

    keys = jax.random.split(key, 16)

    # Node features
    h_p = jax.random.normal(keys[0], (n_protein, n_hidden), jnp.float32)
    h_mf = jax.random.normal(keys[1], (n_mf, n_hidden), jnp.float32)
    h_bp = jax.random.normal(keys[2], (n_bp, n_hidden), jnp.float32)
    h_cc = jax.random.normal(keys[3], (n_cc, n_hidden), jnp.float32)

    # Dense adjacency for GO2P_G (dst=protein rows, src=GO-term cols), ~30% edges.
    def rand_adj(k, shape):
        return (jax.random.uniform(k, shape) < 0.3).astype(jnp.float32)

    graph = {
        "A_mf": rand_adj(keys[4], (n_protein, n_mf)),
        "A_bp": rand_adj(keys[5], (n_protein, n_bp)),
        "A_cc": rand_adj(keys[6], (n_protein, n_cc)),
    }

    # Deterministic GraphConv parameters (Glorot-ish scale), bias kept as (1, H).
    scale = 1.0 / jnp.sqrt(jnp.float32(n_hidden))
    params = {
        "W_mf": jax.random.normal(keys[7], (n_hidden, n_hidden), jnp.float32) * scale,
        "b_mf": jax.random.normal(keys[8], (1, n_hidden), jnp.float32) * 0.01,
        "W_bp": jax.random.normal(keys[9], (n_hidden, n_hidden), jnp.float32) * scale,
        "b_bp": jax.random.normal(keys[10], (1, n_hidden), jnp.float32) * 0.01,
        "W_cc": jax.random.normal(keys[11], (n_hidden, n_hidden), jnp.float32) * scale,
        "b_cc": jax.random.normal(keys[12], (1, n_hidden), jnp.float32) * 0.01,
    }

    # tile_m=8 exercises a multi-step (pipelined) grid even at these toy sizes.
    out = go_to_p(h_p, h_mf, h_bp, h_cc, graph, params, tile_m=8)
    out = jax.block_until_ready(out)

    ref = _ref_forward(h_mf, h_bp, h_cc, graph, params)
    assert out.shape == (n_protein, n_hidden)
    assert jnp.allclose(out, ref, atol=1e-5, rtol=1e-5), "mismatch vs reference"

    print("KERNEL_OK")
</pallas_src>

<mosaic_0001>
module attributes {stable_mosaic.version = 11 : i64} {
  func.func @go2p_kernel(%arg0: i32, %arg1: memref<8x128xbf16, #tpu.memory_space<vmem>>, %arg2: memref<128x128xf32, #tpu.memory_space<vmem>>, %arg3: memref<1x128xf32, #tpu.memory_space<vmem>>, %arg4: memref<8x128xbf16, #tpu.memory_space<vmem>>, %arg5: memref<128x128xf32, #tpu.memory_space<vmem>>, %arg6: memref<1x128xf32, #tpu.memory_space<vmem>>, %arg7: memref<8x128xbf16, #tpu.memory_space<vmem>>, %arg8: memref<128x128xf32, #tpu.memory_space<vmem>>, %arg9: memref<1x128xf32, #tpu.memory_space<vmem>>, %arg10: memref<8x128xf32, #tpu.memory_space<vmem>>) attributes {dimension_semantics = [#tpu.dimension_semantics<parallel>], iteration_bounds = array<i64: 2>, scalar_prefetch = 0 : i64, scratch_operands = 0 : i64, tpu.core_type = #tpu.core_type<tc>, window_params = [{transform_indices = @transform_0, window_bounds = array<i64: 8, 128>}, {pipeline_mode = #tpu.pipeline_mode<synchronous>, transform_indices = @transform_1, window_bounds = array<i64: 128, 128>}, {pipeline_mode = #tpu.pipeline_mode<synchronous>, transform_indices = @transform_2, window_bounds = array<i64: 1, 128>}, {transform_indices = @transform_3, window_bounds = array<i64: 8, 128>}, {pipeline_mode = #tpu.pipeline_mode<synchronous>, transform_indices = @transform_4, window_bounds = array<i64: 128, 128>}, {pipeline_mode = #tpu.pipeline_mode<synchronous>, transform_indices = @transform_5, window_bounds = array<i64: 1, 128>}, {transform_indices = @transform_6, window_bounds = array<i64: 8, 128>}, {pipeline_mode = #tpu.pipeline_mode<synchronous>, transform_indices = @transform_7, window_bounds = array<i64: 128, 128>}, {pipeline_mode = #tpu.pipeline_mode<synchronous>, transform_indices = @transform_8, window_bounds = array<i64: 1, 128>}, {transform_indices = @transform_9, window_bounds = array<i64: 8, 128>}]} {
    %c0 = arith.constant 0 : index
    %c0_0 = arith.constant 0 : index
    %0 = vector.load %arg1[%c0, %c0_0] : memref<8x128xbf16, #tpu.memory_space<vmem>>, vector<8x128xbf16>
    %1 = arith.extf %0 : vector<8x128xbf16> to vector<8x128xf32>
    %c0_1 = arith.constant 0 : index
    %c0_2 = arith.constant 0 : index
    %2 = vector.load %arg2[%c0_1, %c0_2] : memref<128x128xf32, #tpu.memory_space<vmem>>, vector<128x128xf32>
    %cst = arith.constant dense<0.000000e+00> : vector<8x128xf32>
    %3 = tpu.matmul %1, %2, %cst {dimension_numbers = #tpu.dot_dimension_numbers<[1], [0], [0], [1], [0, 0, 1, 1], [], []>} : vector<8x128xf32>, vector<128x128xf32>, vector<8x128xf32> -> vector<8x128xf32>
    %c0_3 = arith.constant 0 : index
    %c0_4 = arith.constant 0 : index
    %4 = vector.load %arg3[%c0_3, %c0_4] : memref<1x128xf32, #tpu.memory_space<vmem>>, vector<1x128xf32>
    %5 = vector.broadcast %4 : vector<1x128xf32> to vector<8x128xf32>
    %6 = arith.addf %3, %5 : vector<8x128xf32>
    %cst_5 = arith.constant 0.000000e+00 : f32
    %7 = vector.broadcast %cst_5 : f32 to vector<8x128xf32>
    %8 = arith.maximumf %6, %7 : vector<8x128xf32>
    %c0_6 = arith.constant 0 : index
    %c0_7 = arith.constant 0 : index
    %9 = vector.load %arg4[%c0_6, %c0_7] : memref<8x128xbf16, #tpu.memory_space<vmem>>, vector<8x128xbf16>
    %10 = arith.extf %9 : vector<8x128xbf16> to vector<8x128xf32>
    %c0_8 = arith.constant 0 : index
    %c0_9 = arith.constant 0 : index
    %11 = vector.load %arg5[%c0_8, %c0_9] : memref<128x128xf32, #tpu.memory_space<vmem>>, vector<128x128xf32>
    %cst_10 = arith.constant dense<0.000000e+00> : vector<8x128xf32>
    %12 = tpu.matmul %10, %11, %cst_10 {dimension_numbers = #tpu.dot_dimension_numbers<[1], [0], [0], [1], [0, 0, 1, 1], [], []>} : vector<8x128xf32>, vector<128x128xf32>, vector<8x128xf32> -> vector<8x128xf32>
    %c0_11 = arith.constant 0 : index
    %c0_12 = arith.constant 0 : index
    %13 = vector.load %arg6[%c0_11, %c0_12] : memref<1x128xf32, #tpu.memory_space<vmem>>, vector<1x128xf32>
    %14 = vector.broadcast %13 : vector<1x128xf32> to vector<8x128xf32>
    %15 = arith.addf %12, %14 : vector<8x128xf32>
    %cst_13 = arith.constant 0.000000e+00 : f32
    %16 = vector.broadcast %cst_13 : f32 to vector<8x128xf32>
    %17 = arith.maximumf %15, %16 : vector<8x128xf32>
    %18 = arith.addf %8, %17 : vector<8x128xf32>
    %c0_14 = arith.constant 0 : index
    %c0_15 = arith.constant 0 : index
    %19 = vector.load %arg7[%c0_14, %c0_15] : memref<8x128xbf16, #tpu.memory_space<vmem>>, vector<8x128xbf16>
    %20 = arith.extf %19 : vector<8x128xbf16> to vector<8x128xf32>
    %c0_16 = arith.constant 0 : index
    %c0_17 = arith.constant 0 : index
    %21 = vector.load %arg8[%c0_16, %c0_17] : memref<128x128xf32, #tpu.memory_space<vmem>>, vector<128x128xf32>
    %cst_18 = arith.constant dense<0.000000e+00> : vector<8x128xf32>
    %22 = tpu.matmul %20, %21, %cst_18 {dimension_numbers = #tpu.dot_dimension_numbers<[1], [0], [0], [1], [0, 0, 1, 1], [], []>} : vector<8x128xf32>, vector<128x128xf32>, vector<8x128xf32> -> vector<8x128xf32>
    %c0_19 = arith.constant 0 : index
    %c0_20 = arith.constant 0 : index
    %23 = vector.load %arg9[%c0_19, %c0_20] : memref<1x128xf32, #tpu.memory_space<vmem>>, vector<1x128xf32>
    %24 = vector.broadcast %23 : vector<1x128xf32> to vector<8x128xf32>
    %25 = arith.addf %22, %24 : vector<8x128xf32>
    %cst_21 = arith.constant 0.000000e+00 : f32
    %26 = vector.broadcast %cst_21 : f32 to vector<8x128xf32>
    %27 = arith.maximumf %25, %26 : vector<8x128xf32>
    %28 = arith.addf %18, %27 : vector<8x128xf32>
    %c0_22 = arith.constant 0 : index
    %c0_23 = arith.constant 0 : index
    %29 = vector.load %arg10[%c0_22, %c0_23] : memref<8x128xf32, #tpu.memory_space<vmem>>, vector<8x128xf32>
    tpu.vector_store %arg10[%c0_22, %c0_23], %28 {strides = array<i32>} : memref<8x128xf32, #tpu.memory_space<vmem>>, vector<8x128xf32>,
    return
  }
  func.func @transform_0(%arg0: i32) -> (i32, i32) {
    %c0_i32 = arith.constant 0 : i32
    %c0_i32_0 = arith.constant 0 : i32
    return %arg0, %c0_i32 : i32, i32
  }
  func.func @transform_1(%arg0: i32) -> (i32, i32) {
    %c0_i32 = arith.constant 0 : i32
    %c0_i32_0 = arith.constant 0 : i32
    %c0_i32_1 = arith.constant 0 : i32
    return %c0_i32, %c0_i32_0 : i32, i32
  }
  func.func @transform_2(%arg0: i32) -> (i32, i32) {
    %c0_i32 = arith.constant 0 : i32
    %c0_i32_0 = arith.constant 0 : i32
    %c0_i32_1 = arith.constant 0 : i32
    return %c0_i32, %c0_i32_0 : i32, i32
  }
  func.func @transform_3(%arg0: i32) -> (i32, i32) {
    %c0_i32 = arith.constant 0 : i32
    %c0_i32_0 = arith.constant 0 : i32
    return %arg0, %c0_i32 : i32, i32
  }
  func.func @transform_4(%arg0: i32) -> (i32, i32) {
    %c0_i32 = arith.constant 0 : i32
    %c0_i32_0 = arith.constant 0 : i32
    %c0_i32_1 = arith.constant 0 : i32
    return %c0_i32, %c0_i32_0 : i32, i32
  }
  func.func @transform_5(%arg0: i32) -> (i32, i32) {
    %c0_i32 = arith.constant 0 : i32
    %c0_i32_0 = arith.constant 0 : i32
    %c0_i32_1 = arith.constant 0 : i32
    return %c0_i32, %c0_i32_0 : i32, i32
  }
  func.func @transform_6(%arg0: i32) -> (i32, i32) {
    %c0_i32 = arith.constant 0 : i32
    %c0_i32_0 = arith.constant 0 : i32
    return %arg0, %c0_i32 : i32, i32
  }
  func.func @transform_7(%arg0: i32) -> (i32, i32) {
    %c0_i32 = arith.constant 0 : i32
    %c0_i32_0 = arith.constant 0 : i32
    %c0_i32_1 = arith.constant 0 : i32
    return %c0_i32, %c0_i32_0 : i32, i32
  }
  func.func @transform_8(%arg0: i32) -> (i32, i32) {
    %c0_i32 = arith.constant 0 : i32
    %c0_i32_0 = arith.constant 0 : i32
    %c0_i32_1 = arith.constant 0 : i32
    return %c0_i32, %c0_i32_0 : i32, i32
  }
  func.func @transform_9(%arg0: i32) -> (i32, i32) {
    %c0_i32 = arith.constant 0 : i32
    %c0_i32_0 = arith.constant 0 : i32
    return %arg0, %c0_i32 : i32, i32
  }
}

</mosaic_0001>

<llo_original>
// kernel: tpu_custom_call.1
$region0: #{tpu_custom_call.1}
  #allocation0 [shape = 'u32[]', space=smem, size = 0x4, offset = 0x4, fixed_abs, tag = 'smem constant byte address 0x4 - core index']
  #allocation1 [shape = 'u32[72,128]{1,0:T(1,128)}', space=vmem, size = 0x9000, scoped, tag = 'internal scratch']
  %s0 = inlined_call_operand.hbm [shape: bf16[16,128], index: 0, kind: input, shape index: {}]
  %s1 = inlined_call_operand.hbm [shape: f32[128,128], index: 1, kind: input, shape index: {}]
  %s2 = inlined_call_operand.vmem [shape: f32[1,128], index: 2, kind: input, shape index: {}]
  %s3 = inlined_call_operand.hbm [shape: bf16[16,128], index: 3, kind: input, shape index: {}]
  %s4 = inlined_call_operand.hbm [shape: f32[128,128], index: 4, kind: input, shape index: {}]
  %s5 = inlined_call_operand.vmem [shape: f32[1,128], index: 5, kind: input, shape index: {}]
  %s6 = inlined_call_operand.hbm [shape: bf16[16,128], index: 6, kind: input, shape index: {}]
  %s7 = inlined_call_operand.hbm [shape: f32[128,128], index: 7, kind: input, shape index: {}]
  %s8 = inlined_call_operand.vmem [shape: f32[1,128], index: 8, kind: input, shape index: {}]
  %s9 = inlined_call_operand.hbm [shape: f32[16,128], index: 9, kind: output, shape index: {}]
  %s10 = sld [smem:[#allocation0]]
  $region93: #{tpu_custom_call.1} parent=0
    _
  %s12 = ssub.s32 1, %s10
  %s13 = scalar_select 0, %s12, %s10
  $region1: #{tpu_custom_call.1} parent=0
    #allocation2 [shape = 'u8[4096]{0}', space=vmem, size = 0x1000, scoped, tag = 'input window, operand 0']
    #allocation3 [shape = 's32[2]{0}', space=sflag, size = 0x8, scoped, tag = 'scoped memory for tpu_custom_call.1']
    #allocation4 [shape = 's32[2]{0}', space=sflag, size = 0x8, scoped, tag = 'scoped memory for tpu_custom_call.1']
    #allocation5 [shape = 'u8[65536]{0}', space=vmem, size = 0x10000, scoped, tag = 'input window, operand 1, single buffered']
    #allocation6 [shape = 's32[1]{0}', space=sflag, size = 0x4, scoped, tag = 'scoped memory for tpu_custom_call.1']
    #allocation7 [shape = 'u8[4096]{0}', space=vmem, size = 0x1000, scoped, tag = 'input window, operand 3']
    #allocation8 [shape = 'u8[65536]{0}', space=vmem, size = 0x10000, scoped, tag = 'input window, operand 4, single buffered']
    #allocation9 [shape = 'u8[4096]{0}', space=vmem, size = 0x1000, scoped, tag = 'input window, operand 6']
    #allocation10 [shape = 's32[2]{0}', space=sflag, size = 0x8, scoped, tag = 'scoped memory for tpu_custom_call.1']
    #allocation11 [shape = 'u8[65536]{0}', space=vmem, size = 0x10000, scoped, tag = 'input window, operand 7, single buffered']
    #allocation12 [shape = 'u8[8192]{0}', space=vmem, size = 0x2000, scoped, tag = 'output window, operand 0']
    %14 = vsyncpa [#allocation3], 0
    %s15 = scalar_lea.sflag [#allocation3], 1
    %16 = vsyncpa %s15, 0
    %17 = vsyncpa [#allocation6], 0
    %18 = vsyncpa [#allocation10], 0
    %s19 = scalar_lea.sflag [#allocation10], 1
    %20 = vsyncpa %s19, 0
    %21 = vsyncpa [#allocation4], 0
    %s22 = scalar_lea.sflag [#allocation4], 1
    %23 = vsyncpa %s22, 0
    loop: start=0, step=1, limit=4
    $region2: #{tpu_custom_call.1} parent=1 // loop_pre_header
      _
    $region3: #{tpu_custom_call.1} parent=1 // loop_header
      %s25 = sphi 0, %s29
      %p26 = scmp.ge.s32.totalorder %s25, 4
      %s35 = sphi 0, %s37
      %s38 = sphi 0, %s35
      %s39 = sphi 0, %s38
      %s55 = sphi 0, %s39
      %s59 = sphi 0, %s59
      %s61 = sphi 0, %s59
      %s62 = sphi 0, %s61
      %s76 = sphi 0, %s62
      %s80 = sphi 0, %s80
      %s82 = sphi 0, %s80
      %s83 = sphi 0, %s82
      %s97 = sphi 0, %s83
      %s103 = sphi 0, %s105
      %s106 = sphi 0, %s103
      %s107 = sphi 0, %s106
      %s123 = sphi 0, %s107
      %s127 = sphi 0, %s127
      %s129 = sphi 0, %s127
      %s130 = sphi 0, %s129
      %s144 = sphi 0, %s130
      %s148 = sphi 0, %s148
      %s150 = sphi 0, %s148
      %s151 = sphi 0, %s150
      %s165 = sphi 0, %s151
      %s171 = sphi 0, %s173
      %s174 = sphi 0, %s171
      %s175 = sphi 0, %s174
      %s191 = sphi 0, %s175
      %s195 = sphi 0, %s195
      %s197 = sphi 0, %s195
      %s198 = sphi 0, %s197
      %s212 = sphi 0, %s198
      %s216 = sphi 0, %s216
      %s218 = sphi 0, %s216
      %s219 = sphi 0, %s218
      %s233 = sphi 0, %s219
      %s239 = sphi 0, %s241
      %s242 = sphi 0, %s239
      %s243 = sphi 0, %s242
      %s259 = sphi 0, %s243
    $region4: #{tpu_custom_call.1} parent=1 // loop_header_branch
      %28 = sbr.rel (%p26) target = $region8
    $region5: #{tpu_custom_call.1} parent=1 // loop_body
      %s30 = ssub.s32 %s25, 1
      %s31 = ssub.s32 %s25, 2
      %s32 = sadd.s32 %s25, 1
      %s33 = ssub.s32 %s25, %s32
      %p34 = scmp.eq.s32.totalorder %s33, 0
      %s36 = sadd.s32 %s35, 1
      %s37 = scalar_select %p34, %s35, %s36
      %p40 = pneg %p34
      %p41 = scmp.eq.s32.totalorder %s25, 1
      %p42 = por %p40, %p41
      %p43 = scmp.ne.s32.totalorder %s35, %s38
      %p44 = scmp.eq.s32.totalorder %s25, 0
      %p45 = por %p43, %p44
      %p46 = scmp.ne.s32.totalorder %s35, %s38
      %p47 = scmp.eq.s32.totalorder %s30, 1
      %p48 = por %p46, %p47
      %p49 = scmp.ne.s32.totalorder %s38, %s39
      %p50 = scmp.eq.s32.totalorder %s30, 0
      %p51 = por %p49, %p50
      %p52 = scmp.ne.s32.totalorder %s38, %s39
      %p53 = scmp.eq.s32.totalorder %s31, 1
      %p54 = por %p52, %p53
      %p56 = scmp.ne.s32.totalorder %s39, %s55
      %p57 = scmp.eq.s32.totalorder %s31, 0
      %p58 = por %p56, %p57
      %s60 = sadd.s32 %s59, 1
      %p63 = scmp.eq.s32.totalorder %s25, 1
      %p64 = scmp.ne.s32.totalorder %s59, %s61
      %p65 = scmp.eq.s32.totalorder %s25, 0
      %p66 = por %p64, %p65
      %p67 = scmp.ne.s32.totalorder %s59, %s61
      %p68 = scmp.eq.s32.totalorder %s30, 1
      %p69 = por %p67, %p68
      %p70 = scmp.ne.s32.totalorder %s61, %s62
      %p71 = scmp.eq.s32.totalorder %s30, 0
      %p72 = por %p70, %p71
      %p73 = scmp.ne.s32.totalorder %s61, %s62
      %p74 = scmp.eq.s32.totalorder %s31, 1
      %p75 = por %p73, %p74
      %p77 = scmp.ne.s32.totalorder %s62, %s76
      %p78 = scmp.eq.s32.totalorder %s31, 0
      %p79 = por %p77, %p78
      %s81 = sadd.s32 %s80, 1
      %p84 = scmp.eq.s32.totalorder %s25, 1
      %p85 = scmp.ne.s32.totalorder %s80, %s82
      %p86 = scmp.eq.s32.totalorder %s25, 0
      %p87 = por %p85, %p86
      %p88 = scmp.ne.s32.totalorder %s80, %s82
      %p89 = scmp.eq.s32.totalorder %s30, 1
      %p90 = por %p88, %p89
      %p91 = scmp.ne.s32.totalorder %s82, %s83
      %p92 = scmp.eq.s32.totalorder %s30, 0
      %p93 = por %p91, %p92
      %p94 = scmp.ne.s32.totalorder %s82, %s83
      %p95 = scmp.eq.s32.totalorder %s31, 1
      %p96 = por %p94, %p95
      %p98 = scmp.ne.s32.totalorder %s83, %s97
      %p99 = scmp.eq.s32.totalorder %s31, 0
      %p100 = por %p98, %p99
      %s101 = ssub.s32 %s25, %s32
      %p102 = scmp.eq.s32.totalorder %s101, 0
      %s104 = sadd.s32 %s103, 1
      %s105 = scalar_select %p102, %s103, %s104
      %p108 = pneg %p102
      %p109 = scmp.eq.s32.totalorder %s25, 1
      %p110 = por %p108, %p109
      %p111 = scmp.ne.s32.totalorder %s103, %s106
      %p112 = scmp.eq.s32.totalorder %s25, 0
      %p113 = por %p111, %p112
      %p114 = scmp.ne.s32.totalorder %s103, %s106
      %p115 = scmp.eq.s32.totalorder %s30, 1
      %p116 = por %p114, %p115
      %p117 = scmp.ne.s32.totalorder %s106, %s107
      %p118 = scmp.eq.s32.totalorder %s30, 0
      %p119 = por %p117, %p118
      %p120 = scmp.ne.s32.totalorder %s106, %s107
      %p121 = scmp.eq.s32.totalorder %s31, 1
      %p122 = por %p120, %p121
      %p124 = scmp.ne.s32.totalorder %s107, %s123
      %p125 = scmp.eq.s32.totalorder %s31, 0
      %p126 = por %p124, %p125
      %s128 = sadd.s32 %s127, 1
      %p131 = scmp.eq.s32.totalorder %s25, 1
      %p132 = scmp.ne.s32.totalorder %s127, %s129
      %p133 = scmp.eq.s32.totalorder %s25, 0
      %p134 = por %p132, %p133
      %p135 = scmp.ne.s32.totalorder %s127, %s129
      %p136 = scmp.eq.s32.totalorder %s30, 1
      %p137 = por %p135, %p136
      %p138 = scmp.ne.s32.totalorder %s129, %s130
      %p139 = scmp.eq.s32.totalorder %s30, 0
      %p140 = por %p138, %p139
      %p141 = scmp.ne.s32.totalorder %s129, %s130
      %p142 = scmp.eq.s32.totalorder %s31, 1
      %p143 = por %p141, %p142
      %p145 = scmp.ne.s32.totalorder %s130, %s144
      %p146 = scmp.eq.s32.totalorder %s31, 0
      %p147 = por %p145, %p146
      %s149 = sadd.s32 %s148, 1
      %p152 = scmp.eq.s32.totalorder %s25, 1
      %p153 = scmp.ne.s32.totalorder %s148, %s150
      %p154 = scmp.eq.s32.totalorder %s25, 0
      %p155 = por %p153, %p154
      %p156 = scmp.ne.s32.totalorder %s148, %s150
      %p157 = scmp.eq.s32.totalorder %s30, 1
      %p158 = por %p156, %p157
      %p159 = scmp.ne.s32.totalorder %s150, %s151
      %p160 = scmp.eq.s32.totalorder %s30, 0
      %p161 = por %p159, %p160
      %p162 = scmp.ne.s32.totalorder %s150, %s151
      %p163 = scmp.eq.s32.totalorder %s31, 1
      %p164 = por %p162, %p163
      %p166 = scmp.ne.s32.totalorder %s151, %s165
      %p167 = scmp.eq.s32.totalorder %s31, 0
      %p168 = por %p166, %p167
      %s169 = ssub.s32 %s25, %s32
      %p170 = scmp.eq.s32.totalorder %s169, 0
      %s172 = sadd.s32 %s171, 1
      %s173 = scalar_select %p170, %s171, %s172
      %p176 = pneg %p170
      %p177 = scmp.eq.s32.totalorder %s25, 1
      %p178 = por %p176, %p177
      %p179 = scmp.ne.s32.totalorder %s171, %s174
      %p180 = scmp.eq.s32.totalorder %s25, 0
      %p181 = por %p179, %p180
      %p182 = scmp.ne.s32.totalorder %s171, %s174
      %p183 = scmp.eq.s32.totalorder %s30, 1
      %p184 = por %p182, %p183
      %p185 = scmp.ne.s32.totalorder %s174, %s175
      %p186 = scmp.eq.s32.totalorder %s30, 0
      %p187 = por %p185, %p186
      %p188 = scmp.ne.s32.totalorder %s174, %s175
      %p189 = scmp.eq.s32.totalorder %s31, 1
      %p190 = por %p188, %p189
      %p192 = scmp.ne.s32.totalorder %s175, %s191
      %p193 = scmp.eq.s32.totalorder %s31, 0
      %p194 = por %p192, %p193
      %s196 = sadd.s32 %s195, 1
      %p199 = scmp.eq.s32.totalorder %s25, 1
      %p200 = scmp.ne.s32.totalorder %s195, %s197
      %p201 = scmp.eq.s32.totalorder %s25, 0
      %p202 = por %p200, %p201
      %p203 = scmp.ne.s32.totalorder %s195, %s197
      %p204 = scmp.eq.s32.totalorder %s30, 1
      %p205 = por %p203, %p204
      %p206 = scmp.ne.s32.totalorder %s197, %s198
      %p207 = scmp.eq.s32.totalorder %s30, 0
      %p208 = por %p206, %p207
      %p209 = scmp.ne.s32.totalorder %s197, %s198
      %p210 = scmp.eq.s32.totalorder %s31, 1
      %p211 = por %p209, %p210
      %p213 = scmp.ne.s32.totalorder %s198, %s212
      %p214 = scmp.eq.s32.totalorder %s31, 0
      %p215 = por %p213, %p214
      %s217 = sadd.s32 %s216, 1
      %p220 = scmp.eq.s32.totalorder %s25, 1
      %p221 = scmp.ne.s32.totalorder %s216, %s218
      %p222 = scmp.eq.s32.totalorder %s25, 0
      %p223 = por %p221, %p222
      %p224 = scmp.ne.s32.totalorder %s216, %s218
      %p225 = scmp.eq.s32.totalorder %s30, 1
      %p226 = por %p224, %p225
      %p227 = scmp.ne.s32.totalorder %s218, %s219
      %p228 = scmp.eq.s32.totalorder %s30, 0
      %p229 = por %p227, %p228
      %p230 = scmp.ne.s32.totalorder %s218, %s219
      %p231 = scmp.eq.s32.totalorder %s31, 1
      %p232 = por %p230, %p231
      %p234 = scmp.ne.s32.totalorder %s219, %s233
      %p235 = scmp.eq.s32.totalorder %s31, 0
      %p236 = por %p234, %p235
      %s237 = ssub.s32 %s25, %s32
      %p238 = scmp.eq.s32.totalorder %s237, 0
      %s240 = sadd.s32 %s239, 1
      %s241 = scalar_select %p238, %s239, %s240
      %p244 = pneg %p238
      %p245 = scmp.eq.s32.totalorder %s25, 1
      %p246 = por %p244, %p245
      %p247 = scmp.ne.s32.totalorder %s239, %s242
      %p248 = scmp.eq.s32.totalorder %s25, 0
      %p249 = por %p247, %p248
      %p250 = scmp.ne.s32.totalorder %s239, %s242
      %p251 = scmp.eq.s32.totalorder %s30, 1
      %p252 = por %p250, %p251
      %p253 = scmp.ne.s32.totalorder %s242, %s243
      %p254 = scmp.eq.s32.totalorder %s30, 0
      %p255 = por %p253, %p254
      %p256 = scmp.ne.s32.totalorder %s242, %s243
      %p257 = scmp.eq.s32.totalorder %s31, 1
      %p258 = por %p256, %p257
      %p260 = scmp.ne.s32.totalorder %s243, %s259
      %p261 = scmp.eq.s32.totalorder %s31, 0
      %p262 = por %p260, %p261
      %p263 = scmp.le.s32.totalorder 1, %s25
      %p264 = scmp.lt.s32.totalorder %s25, 3
      %p265 = pnand %p263, %p264
      %p266 = pneg %p265
      // Predicated region
      $region9: #{tpu_custom_call.1} parent=5 // pred_check
        _
      $region10: #{tpu_custom_call.1} parent=5 // pred_check_branch
        %268 = sbr.rel (%p265) target = $region12
      $region11: #{tpu_custom_call.1} parent=5 // pred_region
        %s269 = ssub.s32 %s25, 1
        // Predicated region
        $region13: #{tpu_custom_call.1} parent=11 // pred_check
          %p270 = pneg %p72
        $region14: #{tpu_custom_call.1} parent=11 // pred_check_branch
          %272 = sbr.rel (%p270) target = $region16
        $region15: #{tpu_custom_call.1} parent=11 // pred_region
          %274 = vsyncadd [#allocation6], 0
          %s275 = sshll.u32 %s1, 4
          %s276 = int_to_ptr.hbm [resolvable:$true] %s275
          %s277 = sshll.u32 [#allocation5], 4
          %s278 = int_to_ptr.vmem [resolvable:$true] %s277
          %283 = dma.hbm_to_vmem [thread:$0]  %s276, 2048, %s278, [#allocation6], 128, 128, 8
        $region16: #{tpu_custom_call.1} parent=11 // pred_fallthru
          _
        // Predicated region
        $region17: #{tpu_custom_call.1} parent=11 // pred_check
          %p284 = pneg %p93
        $region18: #{tpu_custom_call.1} parent=11 // pred_check_branch
          %286 = sbr.rel (%p284) target = $region20
        $region19: #{tpu_custom_call.1} parent=11 // pred_region
          _
        $region20: #{tpu_custom_call.1} parent=11 // pred_fallthru
          _
        // Predicated region
        $region21: #{tpu_custom_call.1} parent=11 // pred_check
          %p287 = pneg %p140
        $region22: #{tpu_custom_call.1} parent=11 // pred_check_branch
          %289 = sbr.rel (%p287) target = $region24
        $region23: #{tpu_custom_call.1} parent=11 // pred_region
          %291 = vsyncadd [#allocation6], 0
          %s292 = sshll.u32 %s4, 4
          %s293 = int_to_ptr.hbm [resolvable:$true] %s292
          %s294 = sshll.u32 [#allocation8], 4
          %s295 = int_to_ptr.vmem [resolvable:$true] %s294
          %300 = dma.hbm_to_vmem [thread:$0]  %s293, 2048, %s295, [#allocation6], 128, 128, 8
        $region24: #{tpu_custom_call.1} parent=11 // pred_fallthru
          _
        // Predicated region
        $region25: #{tpu_custom_call.1} parent=11 // pred_check
          %p301 = pneg %p161
        $region26: #{tpu_custom_call.1} parent=11 // pred_check_branch
          %303 = sbr.rel (%p301) target = $region28
        $region27: #{tpu_custom_call.1} parent=11 // pred_region
          _
        $region28: #{tpu_custom_call.1} parent=11 // pred_fallthru
          _
        // Predicated region
        $region29: #{tpu_custom_call.1} parent=11 // pred_check
          %p304 = pneg %p208
        $region30: #{tpu_custom_call.1} parent=11 // pred_check_branch
          %306 = sbr.rel (%p304) target = $region32
        $region31: #{tpu_custom_call.1} parent=11 // pred_region
          %308 = vsyncadd [#allocation10], 0
          %s309 = sshll.u32 %s7, 4
          %s310 = int_to_ptr.hbm [resolvable:$true] %s309
          %s311 = sshll.u32 [#allocation11], 4
          %s312 = int_to_ptr.vmem [resolvable:$true] %s311
          %317 = dma.hbm_to_vmem [thread:$0]  %s310, 2048, %s312, [#allocation10], 128, 128, 8
        $region32: #{tpu_custom_call.1} parent=11 // pred_fallthru
          _
        // Predicated region
        $region33: #{tpu_custom_call.1} parent=11 // pred_check
          %p318 = pneg %p229
        $region34: #{tpu_custom_call.1} parent=11 // pred_check_branch
          %320 = sbr.rel (%p318) target = $region36
        $region35: #{tpu_custom_call.1} parent=11 // pred_region
          _
        $region36: #{tpu_custom_call.1} parent=11 // pred_fallthru
          _
      $region12: #{tpu_custom_call.1} parent=5 // pred_fallthru
        _
      %p321 = scmp.lt.s32.totalorder %s25, 2
      // Predicated region
      $region37: #{tpu_custom_call.1} parent=5 // pred_check
        %p322 = pneg %p321
      $region38: #{tpu_custom_call.1} parent=5 // pred_check_branch
        %324 = sbr.rel (%p322) target = $region40
      $region39: #{tpu_custom_call.1} parent=5 // pred_region
        // Predicated region
        $region41: #{tpu_custom_call.1} parent=39 // pred_check
          %p325 = pneg %p45
        $region42: #{tpu_custom_call.1} parent=39 // pred_check_branch
          %327 = sbr.rel (%p325) target = $region44
        $region43: #{tpu_custom_call.1} parent=39 // pred_region
          %s328 = sand.u32 %s25, 1
          %s329 = scalar_lea.sflag [#allocation3], %s328
          %s330 = sand.u32 %s35, 1
          %s331 = smul.addr %s330, 4
          %s332 = scalar_lea.vmem [#allocation2], %s331
          %334 = vsyncadd %s329, 0
          %s335 = smul.addr %s25, 4
          %s336 = scalar_lea.hbm %s0, %s335
          %s338 = sshll.u32 %s336, 4
          %s339 = int_to_ptr.hbm [resolvable:$true] %s338
          %s340 = sshll.u32 %s332, 4
          %s341 = int_to_ptr.vmem [resolvable:$true] %s340
          %343 = dma.hbm_to_vmem [thread:$0]  %s339, 64, %s341, %s329
        $region44: #{tpu_custom_call.1} parent=39 // pred_fallthru
          _
        // Predicated region
        $region45: #{tpu_custom_call.1} parent=39 // pred_check
          %p344 = pneg %p113
        $region46: #{tpu_custom_call.1} parent=39 // pred_check_branch
          %346 = sbr.rel (%p344) target = $region48
        $region47: #{tpu_custom_call.1} parent=39 // pred_region
          %s347 = sand.u32 %s25, 1
          %s348 = scalar_lea.sflag [#allocation3], %s347
          %s349 = sand.u32 %s103, 1
          %s350 = smul.addr %s349, 4
          %s351 = scalar_lea.vmem [#allocation7], %s350
          %353 = vsyncadd %s348, 0
          %s354 = smul.addr %s25, 4
          %s355 = scalar_lea.hbm %s3, %s354
          %s357 = sshll.u32 %s355, 4
          %s358 = int_to_ptr.hbm [resolvable:$true] %s357
          %s359 = sshll.u32 %s351, 4
          %s360 = int_to_ptr.vmem [resolvable:$true] %s359
          %362 = dma.hbm_to_vmem [thread:$0]  %s358, 64, %s360, %s348
        $region48: #{tpu_custom_call.1} parent=39 // pred_fallthru
          _
        // Predicated region
        $region49: #{tpu_custom_call.1} parent=39 // pred_check
          %p363 = pneg %p181
        $region50: #{tpu_custom_call.1} parent=39 // pred_check_branch
          %365 = sbr.rel (%p363) target = $region52
        $region51: #{tpu_custom_call.1} parent=39 // pred_region
          %s366 = sand.u32 %s25, 1
          %s367 = scalar_lea.sflag [#allocation10], %s366
          %s368 = sand.u32 %s171, 1
          %s369 = smul.addr %s368, 4
          %s370 = scalar_lea.vmem [#allocation9], %s369
          %372 = vsyncadd %s367, 0
          %s373 = smul.addr %s25, 4
          %s374 = scalar_lea.hbm %s6, %s373
          %s376 = sshll.u32 %s374, 4
          %s377 = int_to_ptr.hbm [resolvable:$true] %s376
          %s378 = sshll.u32 %s370, 4
          %s379 = int_to_ptr.vmem [resolvable:$true] %s378
          %381 = dma.hbm_to_vmem [thread:$0]  %s377, 64, %s379, %s367
        $region52: #{tpu_custom_call.1} parent=39 // pred_fallthru
          _
      $region40: #{tpu_custom_call.1} parent=5 // pred_fallthru
        _
      %p382 = scmp.le.s32.totalorder 1, %s25
      %p383 = scmp.lt.s32.totalorder %s25, 3
      %p384 = pnand %p382, %p383
      %p385 = pneg %p384
      // Predicated region
      $region53: #{tpu_custom_call.1} parent=5 // pred_check
        _
      $region54: #{tpu_custom_call.1} parent=5 // pred_check_branch
        %387 = sbr.rel (%p384) target = $region56
      $region55: #{tpu_custom_call.1} parent=5 // pred_region
        %s388 = ssub.s32 %s25, 1
        %s389 = sand.u32 %s30, 1
        %s390 = scalar_lea.sflag [#allocation3], %s389
        %s391 = sand.u32 %s38, 1
        %s392 = smul.addr %s391, 4
        %s393 = scalar_lea.vmem [#allocation2], %s392
        // Predicated region
        $region57: #{tpu_custom_call.1} parent=55 // pred_check
          %p394 = pneg %p51
        $region58: #{tpu_custom_call.1} parent=55 // pred_check_branch
          %396 = sbr.rel (%p394) target = $region60
        $region59: #{tpu_custom_call.1} parent=55 // pred_region
          %398 = dma.done %s390, 64
        $region60: #{tpu_custom_call.1} parent=55 // pred_fallthru
          _
        // Predicated region
        $region61: #{tpu_custom_call.1} parent=55 // pred_check
          %p399 = pneg %p72
        $region62: #{tpu_custom_call.1} parent=55 // pred_check_branch
          %401 = sbr.rel (%p399) target = $region64
        $region63: #{tpu_custom_call.1} parent=55 // pred_region
          %403 = dma.done [#allocation6], 2048
        $region64: #{tpu_custom_call.1} parent=55 // pred_fallthru
          _
        %s404 = sand.u32 %s30, 1
        %s405 = scalar_lea.sflag [#allocation3], %s404
        %s406 = sand.u32 %s106, 1
        %s407 = smul.addr %s406, 4
        %s408 = scalar_lea.vmem [#allocation7], %s407
        // Predicated region
        $region65: #{tpu_custom_call.1} parent=55 // pred_check
          %p409 = pneg %p119
        $region66: #{tpu_custom_call.1} parent=55 // pred_check_branch
          %411 = sbr.rel (%p409) target = $region68
        $region67: #{tpu_custom_call.1} parent=55 // pred_region
          %413 = dma.done %s405, 64
        $region68: #{tpu_custom_call.1} parent=55 // pred_fallthru
          _
        // Predicated region
        $region69: #{tpu_custom_call.1} parent=55 // pred_check
          %p414 = pneg %p140
        $region70: #{tpu_custom_call.1} parent=55 // pred_check_branch
          %416 = sbr.rel (%p414) target = $region72
        $region71: #{tpu_custom_call.1} parent=55 // pred_region
          %418 = dma.done [#allocation6], 2048
        $region72: #{tpu_custom_call.1} parent=55 // pred_fallthru
          _
        %s419 = sand.u32 %s30, 1
        %s420 = scalar_lea.sflag [#allocation10], %s419
        %s421 = sand.u32 %s174, 1
        %s422 = smul.addr %s421, 4
        %s423 = scalar_lea.vmem [#allocation9], %s422
        // Predicated region
        $region73: #{tpu_custom_call.1} parent=55 // pred_check
          %p424 = pneg %p187
        $region74: #{tpu_custom_call.1} parent=55 // pred_check_branch
          %426 = sbr.rel (%p424) target = $region76
        $region75: #{tpu_custom_call.1} parent=55 // pred_region
          %428 = dma.done %s420, 64
        $region76: #{tpu_custom_call.1} parent=55 // pred_fallthru
          _
        // Predicated region
        $region77: #{tpu_custom_call.1} parent=55 // pred_check
          %p429 = pneg %p208
        $region78: #{tpu_custom_call.1} parent=55 // pred_check_branch
          %431 = sbr.rel (%p429) target = $region80
        $region79: #{tpu_custom_call.1} parent=55 // pred_region
          %433 = dma.done [#allocation10], 2048
        $region80: #{tpu_custom_call.1} parent=55 // pred_fallthru
          _
        %s434 = sand.u32 %s30, 1
        %s435 = scalar_lea.sflag [#allocation3], %s434
        %s436 = sand.u32 %s38, 1
        %s437 = smul.addr %s436, 4
        %s438 = scalar_lea.vmem [#allocation2], %s437
        %p439 = pneg %p51
        %p440 = pneg %p48
        %p441 = pneg %p72
        %p442 = pneg %p69
        %p443 = pneg %p93
        %p444 = pneg %p90
        %s445 = sand.u32 %s30, 1
        %s446 = scalar_lea.sflag [#allocation3], %s445
        %s447 = sand.u32 %s106, 1
        %s448 = smul.addr %s447, 4
        %s449 = scalar_lea.vmem [#allocation7], %s448
        %p450 = pneg %p119
        %p451 = pneg %p116
        %p452 = pneg %p140
        %p453 = pneg %p137
        %p454 = pneg %p161
        %p455 = pneg %p158
        %s456 = sand.u32 %s30, 1
        %s457 = scalar_lea.sflag [#allocation10], %s456
        %s458 = sand.u32 %s174, 1
        %s459 = smul.addr %s458, 4
        %s460 = scalar_lea.vmem [#allocation9], %s459
        %p461 = pneg %p187
        %p462 = pneg %p184
        %p463 = pneg %p208
        %p464 = pneg %p205
        %p465 = pneg %p229
        %p466 = pneg %p226
        %p467 = pneg %p255
        %p468 = pneg %p252
        %s469 = sand.u32 %s242, 1
        %s470 = scalar_lea.sflag [#allocation4], %s469
        %s471 = sand.u32 %s242, 1
        %s472 = smul.addr %s471, 8
        %s473 = scalar_lea.vmem [#allocation12], %s472
        %v474 = vld [vmem:[%s393] sm:$0xf]
        %v475 = vunpack.c.l.bf16 %v474
        %v476 = vld [vmem:[#allocation5] sm:$0xff]
        %v477 = vld [vmem:[#allocation5 + $0x8] sm:$0xff]
        %v478 = vld [vmem:[#allocation5 + $0x10] sm:$0xff]
        %v479 = vld [vmem:[#allocation5 + $0x18] sm:$0xff]
        %v480 = vld [vmem:[#allocation5 + $0x20] sm:$0xff]
        %v481 = vld [vmem:[#allocation5 + $0x28] sm:$0xff]
        %v482 = vld [vmem:[#allocation5 + $0x30] sm:$0xff]
        %v483 = vld [vmem:[#allocation5 + $0x38] sm:$0xff]
        %v484 = vld [vmem:[#allocation5 + $0x40] sm:$0xff]
        %v485 = vld [vmem:[#allocation5 + $0x48] sm:$0xff]
        %v486 = vld [vmem:[#allocation5 + $0x50] sm:$0xff]
        %v487 = vld [vmem:[#allocation5 + $0x58] sm:$0xff]
        %v488 = vld [vmem:[#allocation5 + $0x60] sm:$0xff]
        %v489 = vld [vmem:[#allocation5 + $0x68] sm:$0xff]
        %v490 = vld [vmem:[#allocation5 + $0x70] sm:$0xff]
        %v491 = vld [vmem:[#allocation5 + $0x78] sm:$0xff]
        %v492 = vld [vmem:[%s2] sm:$0x1]
        %v494 = vperm.slane %v492, 0
        %496 = vmatpush.msra.mxu0 %v491
        %497 = vmatpush.msra.mxu0 %v490
        %498 = vmatpush.msra.mxu0 %v489
        %499 = vmatpush.msra.mxu0 %v488
        %500 = vmatpush.msra.mxu0 %v487
        %501 = vmatpush.msra.mxu0 %v486
        %502 = vmatpush.msra.mxu0 %v485
        %503 = vmatpush.msra.mxu0 %v484
        %504 = vmatpush.msra.mxu0 %v483
        %505 = vmatpush.msra.mxu0 %v482
        %506 = vmatpush.msra.mxu0 %v481
        %507 = vmatpush.msra.mxu0 %v480
        %508 = vmatpush.msra.mxu0 %v479
        %509 = vmatpush.msra.mxu0 %v478
        %510 = vmatpush.msra.mxu0 %v477
        %511 = vmatpush.msra.mxu0 %v476
        %512 = vmatmul.f32.gmra.mxu0 %v475
        %v513 = vpop.f32.mrf.mxu0
        %v514 = vadd.f32 %v494, %v513
        %515 = vdwg.mxu0
        %v516 = vmax.f32 %v514, 0.0
        %v517 = vld [vmem:[%s408] sm:$0xf]
        %v518 = vunpack.c.l.bf16 %v517
        %v519 = vld [vmem:[#allocation8] sm:$0xff]
        %v520 = vld [vmem:[#allocation8 + $0x8] sm:$0xff]
        %v521 = vld [vmem:[#allocation8 + $0x10] sm:$0xff]
        %v522 = vld [vmem:[#allocation8 + $0x18] sm:$0xff]
        %v523 = vld [vmem:[#allocation8 + $0x20] sm:$0xff]
        %v524 = vld [vmem:[#allocation8 + $0x28] sm:$0xff]
        %v525 = vld [vmem:[#allocation8 + $0x30] sm:$0xff]
        %v526 = vld [vmem:[#allocation8 + $0x38] sm:$0xff]
        %v527 = vld [vmem:[#allocation8 + $0x40] sm:$0xff]
        %v528 = vld [vmem:[#allocation8 + $0x48] sm:$0xff]
        %v529 = vld [vmem:[#allocation8 + $0x50] sm:$0xff]
        %v530 = vld [vmem:[#allocation8 + $0x58] sm:$0xff]
        %v531 = vld [vmem:[#allocation8 + $0x60] sm:$0xff]
        %v532 = vld [vmem:[#allocation8 + $0x68] sm:$0xff]
        %v533 = vld [vmem:[#allocation8 + $0x70] sm:$0xff]
        %v534 = vld [vmem:[#allocation8 + $0x78] sm:$0xff]
        %v535 = vld [vmem:[%s5] sm:$0x1]
        %v537 = vperm.slane %v535, 0
        %539 = vmatpush.msra.mxu0 %v534
        %540 = vmatpush.msra.mxu0 %v533
        %541 = vmatpush.msra.mxu0 %v532
        %542 = vmatpush.msra.mxu0 %v531
        %543 = vmatpush.msra.mxu0 %v530
        %544 = vmatpush.msra.mxu0 %v529
        %545 = vmatpush.msra.mxu0 %v528
        %546 = vmatpush.msra.mxu0 %v527
        %547 = vmatpush.msra.mxu0 %v526
        %548 = vmatpush.msra.mxu0 %v525
        %549 = vmatpush.msra.mxu0 %v524
        %550 = vmatpush.msra.mxu0 %v523
        %551 = vmatpush.msra.mxu0 %v522
        %552 = vmatpush.msra.mxu0 %v521
        %553 = vmatpush.msra.mxu0 %v520
        %554 = vmatpush.msra.mxu0 %v519
        %555 = vmatmul.f32.gmra.mxu0 %v518
        %v556 = vpop.f32.mrf.mxu0
        %v557 = vadd.f32 %v537, %v556
        %558 = vdwg.mxu0
        %v559 = vmax.f32 %v557, 0.0
        %v560 = vadd.f32 %v516, %v559
        %v561 = vld [vmem:[%s423] sm:$0xf]
        %v562 = vunpack.c.l.bf16 %v561
        %v563 = vld [vmem:[#allocation11] sm:$0xff]
        %v564 = vld [vmem:[#allocation11 + $0x8] sm:$0xff]
        %v565 = vld [vmem:[#allocation11 + $0x10] sm:$0xff]
        %v566 = vld [vmem:[#allocation11 + $0x18] sm:$0xff]
        %v567 = vld [vmem:[#allocation11 + $0x20] sm:$0xff]
        %v568 = vld [vmem:[#allocation11 + $0x28] sm:$0xff]
        %v569 = vld [vmem:[#allocation11 + $0x30] sm:$0xff]
        %v570 = vld [vmem:[#allocation11 + $0x38] sm:$0xff]
        %v571 = vld [vmem:[#allocation11 + $0x40] sm:$0xff]
        %v572 = vld [vmem:[#allocation11 + $0x48] sm:$0xff]
        %v573 = vld [vmem:[#allocation11 + $0x50] sm:$0xff]
        %v574 = vld [vmem:[#allocation11 + $0x58] sm:$0xff]
        %v575 = vld [vmem:[#allocation11 + $0x60] sm:$0xff]
        %v576 = vld [vmem:[#allocation11 + $0x68] sm:$0xff]
        %v577 = vld [vmem:[#allocation11 + $0x70] sm:$0xff]
        %v578 = vld [vmem:[#allocation11 + $0x78] sm:$0xff]
        %v579 = vld [vmem:[%s8] sm:$0x1]
        %v581 = vperm.slane %v579, 0
        %583 = vmatpush.msra.mxu0 %v578
        %584 = vmatpush.msra.mxu0 %v577
        %585 = vmatpush.msra.mxu0 %v576
        %586 = vmatpush.msra.mxu0 %v575
        %587 = vmatpush.msra.mxu0 %v574
        %588 = vmatpush.msra.mxu0 %v573
        %589 = vmatpush.msra.mxu0 %v572
        %590 = vmatpush.msra.mxu0 %v571
        %591 = vmatpush.msra.mxu0 %v570
        %592 = vmatpush.msra.mxu0 %v569
        %593 = vmatpush.msra.mxu0 %v568
        %594 = vmatpush.msra.mxu0 %v567
        %595 = vmatpush.msra.mxu0 %v566
        %596 = vmatpush.msra.mxu0 %v565
        %597 = vmatpush.msra.mxu0 %v564
        %598 = vmatpush.msra.mxu0 %v563
        %599 = vmatmul.f32.gmra.mxu0 %v562
        %v600 = vpop.f32.mrf.mxu0
        %v601 = vadd.f32 %v581, %v600
        %602 = vdwg.mxu0
        %v603 = vmax.f32 %v601, 0.0
        %v604 = vadd.f32 %v560, %v603
        %605 = vst [vmem:[%s473] sm:$0xff] %v604
        %s606 = sand.u32 %s242, 1
        %s607 = scalar_lea.sflag [#allocation4], %s606
        %s608 = sand.u32 %s242, 1
        %s609 = smul.addr %s608, 8
        %s610 = scalar_lea.vmem [#allocation12], %s609
        // Predicated region
        $region81: #{tpu_custom_call.1} parent=55 // pred_check
          %p611 = pneg %p252
        $region82: #{tpu_custom_call.1} parent=55 // pred_check_branch
          %613 = sbr.rel (%p611) target = $region84
        $region83: #{tpu_custom_call.1} parent=55 // pred_region
          %615 = vsyncadd %s607, 0
          %s616 = smul.addr %s30, 8
          %s617 = scalar_lea.hbm %s9, %s616
          %s619 = sshll.u32 %s610, 4
          %s620 = int_to_ptr.vmem [resolvable:$true] %s619
          %s621 = sshll.u32 %s617, 4
          %s622 = int_to_ptr.hbm [resolvable:$true] %s621
          %624 = dma.vmem_to_hbm [thread:$0]  %s620, 128, %s622, %s607
        $region84: #{tpu_custom_call.1} parent=55 // pred_fallthru
          _
      $region56: #{tpu_custom_call.1} parent=5 // pred_fallthru
        _
      %p625 = scmp.le.s32.totalorder 2, %s25
      // Predicated region
      $region85: #{tpu_custom_call.1} parent=5 // pred_check
        %p626 = pneg %p625
      $region86: #{tpu_custom_call.1} parent=5 // pred_check_branch
        %628 = sbr.rel (%p626) target = $region88
      $region87: #{tpu_custom_call.1} parent=5 // pred_region
        %s629 = ssub.s32 %s25, 2
        // Predicated region
        $region89: #{tpu_custom_call.1} parent=87 // pred_check
          %p630 = pneg %p258
        $region90: #{tpu_custom_call.1} parent=87 // pred_check_branch
          %632 = sbr.rel (%p630) target = $region92
        $region91: #{tpu_custom_call.1} parent=87 // pred_region
          %s633 = sand.u32 %s243, 1
          %s634 = scalar_lea.sflag [#allocation4], %s633
          %s635 = sand.u32 %s243, 1
          %s636 = smul.addr %s635, 8
          %s637 = scalar_lea.vmem [#allocation12], %s636
          %639 = dma.done %s634, 128
        $region92: #{tpu_custom_call.1} parent=87 // pred_fallthru
          _
      $region88: #{tpu_custom_call.1} parent=5 // pred_fallthru
        _
    $region6: #{tpu_custom_call.1} parent=1 // loop_footer
      %s29 = sadd.s32 1, %s25
    $region7: #{tpu_custom_call.1} parent=1 // loop_footer_branch
      %24 = sbr.rel target = $region3
    $region8: #{tpu_custom_call.1} parent=1 // loop_exit
      _
    %640 = vsyncpa [#allocation3], 1
    %s641 = scalar_lea.sflag [#allocation3], 1
    %642 = vsyncpa %s641, 1
    %643 = vsyncpa [#allocation6], 1
    %644 = vsyncpa [#allocation10], 1
    %s645 = scalar_lea.sflag [#allocation10], 1
    %646 = vsyncpa %s645, 1
    %647 = vsyncpa [#allocation4], 1
    %s648 = scalar_lea.sflag [#allocation4], 1
    %649 = vsyncpa %s648, 1

</llo_original>
